<compile_context>
chip_gen: v7x
topology: tpu7x:2x2x1
jax: 0.10.0
libtpu: 0.0.40
codegen_flags: <defaults>
</compile_context>

<pallas_src>
import functools

import jax
import jax.numpy as jnp
from jax.experimental import pallas as pl
from jax.experimental.pallas import tpu as pltpu


def _round_up(v, m):
    return ((v + m - 1) // m) * m


def _make_kernel(chunks, kh_offsets, out_dtype):
    """Fused conv+BN kernel.

    chunks:     static list of (out_row_start, in_row_start, n_rows)
    kh_offsets: static per-kh row offset inside the input tile
    """

    def kernel(z_ref, w_ref, b_ref, o_ref):
        # z_ref: (TH, Kc)       bf16  overlapping input tile, KW taps folded in lanes
        # w_ref: (KH, Kc, TOC)  bf16  BN-scaled weights for this OC tile
        # b_ref: (1, TOC)       f32   folded BN bias for this OC tile
        # o_ref: (M, TOC)       bf16  output tile (flattened output rows x chans)
        bias = b_ref[...]
        for o0, i0, rows in chunks:                    # statically unrolled
            acc = None
            for kh, off in enumerate(kh_offsets):      # KH dots, K = KW*C
                lhs = z_ref[i0 + off:i0 + off + rows, :]
                part = jnp.dot(lhs, w_ref[kh],
                               preferred_element_type=jnp.float32)
                acc = part if acc is None else acc + part
            o_ref[o0:o0 + rows, :] = (acc + bias).astype(out_dtype)

    return kernel


def conv_bn_forward(x, weight, gamma, beta, running_mean, running_var, *,
                    stride=1, padding=0, dilation=1, groups=1, eps=1e-5):
    """Forward of _ConvBN (eval-mode BatchNorm). x: [N,C,H,W] -> [N,OC,OH,OW]."""
    if groups != 1:
        # TODO(synk): grouped convolution (groups != 1) not implemented.
        raise NotImplementedError("groups != 1 is not supported")
    # TODO(synk): training-mode BN (batch statistics + running-stat updates) not
    # implemented; this is the standard fused-inference forward (running stats).

    N, C, H, W = x.shape
    OC, _, KH, KW = weight.shape
    s, d, p = stride, dilation, padding

    OHs = (H + 2 * p - d * (KH - 1) - 1) // s + 1      # output height
    OWs = (W + 2 * p - d * (KW - 1) - 1) // s + 1      # output width
    Wg = OWs                                           # flat-grid row width
    Kc = KW * C                                        # folded GEMM depth
    OCp = _round_up(OC, 128)                           # lane-dense out channels
    TOC = min(OCp, 256)                                # OC tile (multiple of 128)
    out_dtype = jnp.bfloat16

    # ---- per-generation VMEM budget -------------------------------------------
    try:
        vmem_cap = pltpu.get_tpu_info().vmem_capacity_bytes
    except Exception:
        vmem_cap = 64 * 1024 * 1024                    # conservative (v7x-sized)
    vmem_limit = min(int(vmem_cap * 3 // 4), 96 * 1024 * 1024)
    budget = int(vmem_limit * 0.8)                     # headroom for compiler scratch

    # ---- choose how many output rows each grid step produces ------------------
    def resident_bytes(toh):
        th_rows = ((toh - 1) * s + (KH - 1) * d + 1) * Wg
        m_rows = toh * Wg
        in_b = 2 * _round_up(th_rows, 16) * _round_up(Kc, 128) * 2   # 2x bf16 input tile
        out_b = 2 * _round_up(m_rows, 16) * TOC * 2                  # 2x bf16 out tile
        w_b = 2 * KH * _round_up(Kc, 16) * TOC * 2                   # 2x bf16 weights
        b_b = 2 * 16 * TOC * 4
        return in_b + out_b + w_b + b_b

    toh = min(OHs, max(1, 4096 // Wg))       # big tiles amortise per-step overhead
    if N == 1 and OHs > 1:                   # keep >= 2 grid cells for megacore
        toh = min(toh, -(-OHs // 2))
    while toh > 1 and resident_bytes(toh) > budget:
        toh -= 1
    T = -(-OHs // toh)
    OHp = T * toh
    M = toh * Wg                                       # output rows per grid step
    TH = ((toh - 1) * s + (KH - 1) * d + 1) * Wg       # input rows per grid step

    # ---- fold BatchNorm into per-output-channel scale / bias ------------------
    scale = gamma * jax.lax.rsqrt(running_var + eps)
    bias = beta - running_mean * scale

    # ---- padded NHWC input with the KW taps folded into the lane dim ----------
    HP_need = (OHp - 1) * s + (KH - 1) * d + 1
    pad_h_hi = max(0, HP_need - H - p)
    x_nhwc = jnp.transpose(x, (0, 2, 3, 1))
    xpad = jnp.pad(x_nhwc, ((0, 0), (p, pad_h_hi), (p, p), (0, 0)))
    xpad = xpad.astype(jnp.bfloat16)
    HPt = xpad.shape[1]
    # width-fold (+ native width stride): z[n, hh, ow, kw*C + c] = xpad[n, hh, ow*s + kw*d, c]
    taps = [xpad[:, :, kw * d:kw * d + (OWs - 1) * s + 1:s, :] for kw in range(KW)]
    z = jnp.concatenate(taps, axis=-1).reshape(N, HPt * Wg, Kc)
    # Pre-built (slightly overlapping) row tiles: one auto-pipelined input
    # stream, no in-kernel halo copy / slab scratch.  Overlap is (KH-1)*d rows.
    tiles = jnp.stack([z[:, t * toh * s * Wg:t * toh * s * Wg + TH, :]
                       for t in range(T)], axis=1)
    tiles = tiles.reshape(N * T, TH, Kc)

    # ---- weights: fold BN scale, reorder to (KH, KW*C, OCp), bf16 -------------
    w = weight * scale[:, None, None, None]                    # (OC, C, KH, KW)
    w = jnp.transpose(w, (2, 3, 1, 0)).reshape(KH, Kc, OC)     # (KH, KW*C, OC)
    w = jnp.pad(w, ((0, 0), (0, 0), (0, OCp - OC))).astype(jnp.bfloat16)
    b2 = jnp.pad(bias, (0, OCp - OC)).reshape(1, OCp).astype(jnp.float32)

    # ---- static row chunking so the live f32 accumulator stays <= ~64 KiB -----
    row_cap = max(8, (64 * 1024) // (TOC * 4))
    chunks = []
    if s == 1:
        g0 = 0
        while g0 < M:                         # contiguous flat output grid
            rows = min(row_cap, M - g0)
            chunks.append((g0, g0, rows))
            g0 += rows
    else:
        for j in range(toh):                  # per output h-row (contiguous unit)
            w0 = 0
            while w0 < Wg:
                rows = min(row_cap, Wg - w0)
                chunks.append((j * Wg + w0, j * s * Wg + w0, rows))
                w0 += rows
    kh_offsets = tuple(kh * d * Wg for kh in range(KH))
    kernel = _make_kernel(chunks, kh_offsets, out_dtype)

    NT = N * T
    OCT = OCp // TOC
    flops = 2 * NT * M * Kc * OCp
    bytes_accessed = tiles.size * 2 + w.size * 2 + b2.size * 4 + NT * M * OCp * 2

    out_flat = pl.pallas_call(
        kernel,
        out_shape=jax.ShapeDtypeStruct((NT, M, OCp), out_dtype),
        grid_spec=pltpu.PrefetchScalarGridSpec(
            num_scalar_prefetch=0,
            grid=(NT, OCT),
            in_specs=[
                pl.BlockSpec((None, TH, Kc), lambda nt, oc: (nt, 0, 0)),
                pl.BlockSpec((KH, Kc, TOC), lambda nt, oc: (0, 0, oc)),
                pl.BlockSpec((1, TOC), lambda nt, oc: (0, oc)),
            ],
            out_specs=pl.BlockSpec((None, M, TOC), lambda nt, oc: (nt, 0, oc)),
        ),
        compiler_params=pltpu.CompilerParams(
            dimension_semantics=("parallel", "parallel"),
            vmem_limit_bytes=vmem_limit),
        cost_estimate=pl.CostEstimate(
            flops=flops, transcendentals=0, bytes_accessed=bytes_accessed),
    )(tiles, w, b2)

    out = out_flat.reshape(N, OHp, Wg, OCp)[:, :OHs, :, :OC]
    out = jnp.transpose(out, (0, 3, 1, 2))
    return out.astype(x.dtype)


def _reference(x, weight, gamma, beta, running_mean, running_var,
               *, stride, padding, dilation, eps=1e-5):
    y = jax.lax.conv_general_dilated(
        x, weight,
        window_strides=(stride, stride),
        padding=[(padding, padding), (padding, padding)],
        rhs_dilation=(dilation, dilation),
        dimension_numbers=("NCHW", "OIHW", "NCHW"))
    sc = (gamma / jnp.sqrt(running_var + eps)).reshape(1, -1, 1, 1)
    bi = (beta - running_mean * gamma / jnp.sqrt(running_var + eps)).reshape(1, -1, 1, 1)
    return y * sc + bi


if __name__ == "__main__":
    key = jax.random.PRNGKey(0)
    k_x, k_w, k_g, k_b, k_m, k_v = jax.random.split(key, 6)

    # _ConvBN(in_channels=4, out_channels=8, kernel_size=3, stride=1, padding=1)
    N, C, H, W = 2, 4, 16, 16
    OC, KH, KW = 8, 3, 3

    x = jax.random.normal(k_x, (N, C, H, W), dtype=jnp.float32)
    weight = jax.random.normal(k_w, (OC, C, KH, KW), dtype=jnp.float32) * 0.1
    gamma = jax.random.normal(k_g, (OC,), dtype=jnp.float32) * 0.1 + 1.0
    beta = jax.random.normal(k_b, (OC,), dtype=jnp.float32) * 0.1
    running_mean = jax.random.normal(k_m, (OC,), dtype=jnp.float32) * 0.1
    running_var = jnp.abs(jax.random.normal(k_v, (OC,), dtype=jnp.float32)) * 0.1 + 1.0

    # stride=1 (module default config) and a native stride=2 downsampling case.
    for stride, padding in ((1, 1), (2, 1)):
        fwd = jax.jit(functools.partial(conv_bn_forward, stride=stride,
                                        padding=padding, dilation=1))
        out = jax.block_until_ready(fwd(x, weight, gamma, beta,
                                        running_mean, running_var))
        ref = _reference(x, weight, gamma, beta, running_mean, running_var,
                         stride=stride, padding=padding, dilation=1)
        assert out.shape == ref.shape, (out.shape, ref.shape)
        # bf16 MXU operands + bf16 output (f32 accumulation) -> loosened tolerance.
        err = float(jnp.max(jnp.abs(out - ref)))
        assert jnp.allclose(out, ref, atol=5e-2, rtol=5e-2), (stride, err)

    print("KERNEL_OK")
</pallas_src>

<mosaic_0001>
module attributes {stable_mosaic.version = 11 : i64} {
  func.func @kernel(%arg0: i32, %arg1: i32, %arg2: memref<1x288x12xbf16, #tpu.memory_space<vmem>>, %arg3: memref<3x12x128xbf16, #tpu.memory_space<vmem>>, %arg4: memref<1x128xf32, #tpu.memory_space<vmem>>, %arg5: memref<1x256x128xbf16, #tpu.memory_space<vmem>>) attributes {dimension_semantics = [#tpu.dimension_semantics<parallel>, #tpu.dimension_semantics<parallel>], iteration_bounds = array<i64: 2, 1>, scalar_prefetch = 0 : i64, scratch_operands = 0 : i64, tpu.core_type = #tpu.core_type<tc>, window_params = [{transform_indices = @transform_0, window_bounds = array<i64: 1, 288, 12>}, {transform_indices = @transform_1, window_bounds = array<i64: 3, 12, 128>}, {transform_indices = @transform_2, window_bounds = array<i64: 1, 128>}, {transform_indices = @transform_3, window_bounds = array<i64: 1, 256, 128>}]} {
    %c0 = arith.constant 0 : index
    %c0_0 = arith.constant 0 : index
    %0 = vector.load %arg4[%c0, %c0_0] : memref<1x128xf32, #tpu.memory_space<vmem>>, vector<1x128xf32>
    %c0_1 = arith.constant 0 : index
    %c0_2 = arith.constant 0 : index
    %c0_3 = arith.constant 0 : index
    %1 = vector.load %arg2[%c0_1, %c0_2, %c0_3] : memref<1x288x12xbf16, #tpu.memory_space<vmem>>, vector<1x128x12xbf16>
    %2 = vector.shape_cast %1 : vector<1x128x12xbf16> to vector<128x12xbf16>
    %c0_4 = arith.constant 0 : index
    %c0_5 = arith.constant 0 : index
    %c0_6 = arith.constant 0 : index
    %3 = vector.load %arg3[%c0_4, %c0_5, %c0_6] : memref<3x12x128xbf16, #tpu.memory_space<vmem>>, vector<1x12x128xbf16>
    %4 = vector.shape_cast %3 : vector<1x12x128xbf16> to vector<12x128xbf16>
    %cst = arith.constant dense<0.000000e+00> : vector<128x128xf32>
    %5 = tpu.matmul %2, %4, %cst {dimension_numbers = #tpu.dot_dimension_numbers<[1], [0], [0], [1], [0, 0, 1, 1], [], []>} : vector<128x12xbf16>, vector<12x128xbf16>, vector<128x128xf32> -> vector<128x128xf32>
    %c0_7 = arith.constant 0 : index
    %c16 = arith.constant 16 : index
    %c0_8 = arith.constant 0 : index
    %6 = vector.load %arg2[%c0_7, %c16, %c0_8] : memref<1x288x12xbf16, #tpu.memory_space<vmem>>, vector<1x128x12xbf16>
    %7 = vector.shape_cast %6 : vector<1x128x12xbf16> to vector<128x12xbf16>
    %c1 = arith.constant 1 : index
    %c0_9 = arith.constant 0 : index
    %c0_10 = arith.constant 0 : index
    %8 = vector.load %arg3[%c1, %c0_9, %c0_10] : memref<3x12x128xbf16, #tpu.memory_space<vmem>>, vector<1x12x128xbf16>
    %9 = vector.shape_cast %8 : vector<1x12x128xbf16> to vector<12x128xbf16>
    %cst_11 = arith.constant dense<0.000000e+00> : vector<128x128xf32>
    %10 = tpu.matmul %7, %9, %cst_11 {dimension_numbers = #tpu.dot_dimension_numbers<[1], [0], [0], [1], [0, 0, 1, 1], [], []>} : vector<128x12xbf16>, vector<12x128xbf16>, vector<128x128xf32> -> vector<128x128xf32>
    %11 = arith.addf %5, %10 : vector<128x128xf32>
    %c0_12 = arith.constant 0 : index
    %c32 = arith.constant 32 : index
    %c0_13 = arith.constant 0 : index
    %12 = vector.load %arg2[%c0_12, %c32, %c0_13] : memref<1x288x12xbf16, #tpu.memory_space<vmem>>, vector<1x128x12xbf16>
    %13 = vector.shape_cast %12 : vector<1x128x12xbf16> to vector<128x12xbf16>
    %c2 = arith.constant 2 : index
    %c0_14 = arith.constant 0 : index
    %c0_15 = arith.constant 0 : index
    %14 = vector.load %arg3[%c2, %c0_14, %c0_15] : memref<3x12x128xbf16, #tpu.memory_space<vmem>>, vector<1x12x128xbf16>
    %15 = vector.shape_cast %14 : vector<1x12x128xbf16> to vector<12x128xbf16>
    %cst_16 = arith.constant dense<0.000000e+00> : vector<128x128xf32>
    %16 = tpu.matmul %13, %15, %cst_16 {dimension_numbers = #tpu.dot_dimension_numbers<[1], [0], [0], [1], [0, 0, 1, 1], [], []>} : vector<128x12xbf16>, vector<12x128xbf16>, vector<128x128xf32> -> vector<128x128xf32>
    %17 = arith.addf %11, %16 : vector<128x128xf32>
    %18 = vector.broadcast %0 : vector<1x128xf32> to vector<128x128xf32>
    %19 = arith.addf %17, %18 : vector<128x128xf32>
    %20 = arith.truncf %19 : vector<128x128xf32> to vector<128x128xbf16>
    %c0_17 = arith.constant 0 : index
    %c0_18 = arith.constant 0 : index
    %c0_19 = arith.constant 0 : index
    %21 = vector.load %arg5[%c0_17, %c0_18, %c0_19] : memref<1x256x128xbf16, #tpu.memory_space<vmem>>, vector<1x128x128xbf16>
    %22 = vector.shape_cast %21 : vector<1x128x128xbf16> to vector<128x128xbf16>
    %23 = vector.shape_cast %20 : vector<128x128xbf16> to vector<1x128x128xbf16>
    tpu.vector_store %arg5[%c0_17, %c0_18, %c0_19], %23 {strides = array<i32>} : memref<1x256x128xbf16, #tpu.memory_space<vmem>>, vector<1x128x128xbf16>,
    %c0_20 = arith.constant 0 : index
    %c128 = arith.constant 128 : index
    %c0_21 = arith.constant 0 : index
    %24 = vector.load %arg2[%c0_20, %c128, %c0_21] : memref<1x288x12xbf16, #tpu.memory_space<vmem>>, vector<1x128x12xbf16>
    %25 = vector.shape_cast %24 : vector<1x128x12xbf16> to vector<128x12xbf16>
    %c0_22 = arith.constant 0 : index
    %c0_23 = arith.constant 0 : index
    %c0_24 = arith.constant 0 : index
    %26 = vector.load %arg3[%c0_22, %c0_23, %c0_24] : memref<3x12x128xbf16, #tpu.memory_space<vmem>>, vector<1x12x128xbf16>
    %27 = vector.shape_cast %26 : vector<1x12x128xbf16> to vector<12x128xbf16>
    %cst_25 = arith.constant dense<0.000000e+00> : vector<128x128xf32>
    %28 = tpu.matmul %25, %27, %cst_25 {dimension_numbers = #tpu.dot_dimension_numbers<[1], [0], [0], [1], [0, 0, 1, 1], [], []>} : vector<128x12xbf16>, vector<12x128xbf16>, vector<128x128xf32> -> vector<128x128xf32>
    %c0_26 = arith.constant 0 : index
    %c144 = arith.constant 144 : index
    %c0_27 = arith.constant 0 : index
    %29 = vector.load %arg2[%c0_26, %c144, %c0_27] : memref<1x288x12xbf16, #tpu.memory_space<vmem>>, vector<1x128x12xbf16>
    %30 = vector.shape_cast %29 : vector<1x128x12xbf16> to vector<128x12xbf16>
    %c1_28 = arith.constant 1 : index
    %c0_29 = arith.constant 0 : index
    %c0_30 = arith.constant 0 : index
    %31 = vector.load %arg3[%c1_28, %c0_29, %c0_30] : memref<3x12x128xbf16, #tpu.memory_space<vmem>>, vector<1x12x128xbf16>
    %32 = vector.shape_cast %31 : vector<1x12x128xbf16> to vector<12x128xbf16>
    %cst_31 = arith.constant dense<0.000000e+00> : vector<128x128xf32>
    %33 = tpu.matmul %30, %32, %cst_31 {dimension_numbers = #tpu.dot_dimension_numbers<[1], [0], [0], [1], [0, 0, 1, 1], [], []>} : vector<128x12xbf16>, vector<12x128xbf16>, vector<128x128xf32> -> vector<128x128xf32>
    %34 = arith.addf %28, %33 : vector<128x128xf32>
    %c0_32 = arith.constant 0 : index
    %c160 = arith.constant 160 : index
    %c0_33 = arith.constant 0 : index
    %35 = vector.load %arg2[%c0_32, %c160, %c0_33] : memref<1x288x12xbf16, #tpu.memory_space<vmem>>, vector<1x128x12xbf16>
    %36 = vector.shape_cast %35 : vector<1x128x12xbf16> to vector<128x12xbf16>
    %c2_34 = arith.constant 2 : index
    %c0_35 = arith.constant 0 : index
    %c0_36 = arith.constant 0 : index
    %37 = vector.load %arg3[%c2_34, %c0_35, %c0_36] : memref<3x12x128xbf16, #tpu.memory_space<vmem>>, vector<1x12x128xbf16>
    %38 = vector.shape_cast %37 : vector<1x12x128xbf16> to vector<12x128xbf16>
    %cst_37 = arith.constant dense<0.000000e+00> : vector<128x128xf32>
    %39 = tpu.matmul %36, %38, %cst_37 {dimension_numbers = #tpu.dot_dimension_numbers<[1], [0], [0], [1], [0, 0, 1, 1], [], []>} : vector<128x12xbf16>, vector<12x128xbf16>, vector<128x128xf32> -> vector<128x128xf32>
    %40 = arith.addf %34, %39 : vector<128x128xf32>
    %41 = vector.broadcast %0 : vector<1x128xf32> to vector<128x128xf32>
    %42 = arith.addf %40, %41 : vector<128x128xf32>
    %43 = arith.truncf %42 : vector<128x128xf32> to vector<128x128xbf16>
    %c0_38 = arith.constant 0 : index
    %c128_39 = arith.constant 128 : index
    %c0_40 = arith.constant 0 : index
    %44 = vector.load %arg5[%c0_38, %c128_39, %c0_40] : memref<1x256x128xbf16, #tpu.memory_space<vmem>>, vector<1x128x128xbf16>
    %45 = vector.shape_cast %44 : vector<1x128x128xbf16> to vector<128x128xbf16>
    %46 = vector.shape_cast %43 : vector<128x128xbf16> to vector<1x128x128xbf16>
    tpu.vector_store %arg5[%c0_38, %c128_39, %c0_40], %46 {strides = array<i32>} : memref<1x256x128xbf16, #tpu.memory_space<vmem>>, vector<1x128x128xbf16>,
    return
  }
  func.func @transform_0(%arg0: i32, %arg1: i32) -> (i32, i32, i32) {
    %c0_i32 = arith.constant 0 : i32
    %c0_i32_0 = arith.constant 0 : i32
    %c0_i32_1 = arith.constant 0 : i32
    return %arg0, %c0_i32, %c0_i32_0 : i32, i32, i32
  }
  func.func @transform_1(%arg0: i32, %arg1: i32) -> (i32, i32, i32) {
    %c0_i32 = arith.constant 0 : i32
    %c0_i32_0 = arith.constant 0 : i32
    %c0_i32_1 = arith.constant 0 : i32
    return %c0_i32, %c0_i32_0, %arg1 : i32, i32, i32
  }
  func.func @transform_2(%arg0: i32, %arg1: i32) -> (i32, i32) {
    %c0_i32 = arith.constant 0 : i32
    %c0_i32_0 = arith.constant 0 : i32
    return %c0_i32, %arg1 : i32, i32
  }
  func.func @transform_3(%arg0: i32, %arg1: i32) -> (i32, i32, i32) {
    %c0_i32 = arith.constant 0 : i32
    %c0_i32_0 = arith.constant 0 : i32
    return %arg0, %c0_i32, %arg1 : i32, i32, i32
  }
}

</mosaic_0001>

<llo_original>
// kernel: conv_bn_forward.1
$region0: #{conv_bn_forward.1}
  #allocation0 [shape = 'u32[]', space=smem, size = 0x4, offset = 0x4, fixed_abs, tag = 'smem constant byte address 0x4 - core index']
  #allocation1 [shape = 'u32[144,128]{1,0:T(1,128)}', space=vmem, size = 0x12000, scoped, tag = 'internal scratch']
  %s0 = inlined_call_operand.vmem [shape: bf16[2,288,12], index: 0, kind: input, shape index: {}]
  %s1 = inlined_call_operand.vmem [shape: bf16[3,12,128], index: 1, kind: input, shape index: {}]
  %s2 = inlined_call_operand.vmem [shape: f32[1,128], index: 2, kind: input, shape index: {}]
  %s3 = inlined_call_operand.vmem [shape: bf16[2,256,128], index: 3, kind: output, shape index: {}]
  %s4 = sld [smem:[#allocation0]]
  $region45: #{conv_bn_forward.1} parent=0
    _
  %s6 = ssub.s32 1, %s4
  %s7 = scalar_select 0, %s6, %s4
  loop: start=0, step=1, limit=4
  $region2: #{conv_bn_forward.1} parent=0 // loop_pre_header
    _
  $region3: #{conv_bn_forward.1} parent=0 // loop_header
    %s9 = sphi 0, %s13
    %p10 = scmp.ge.s32.totalorder %s9, 4
    %s16 = sphi 0, %s28
    %s17 = sphi 0, %s24
    %s18 = sphi 0, %s16
    %s19 = sphi 0, %s17
    %s20 = sphi 0, %s18
    %s21 = sphi 0, %s19
    %s31 = sphi 0, %s33
    %s34 = sphi 0, %s31
    %s35 = sphi 0, %s34
    %s51 = sphi 0, %s35
    %s57 = sphi 0, %s59
    %s60 = sphi 0, %s57
    %s61 = sphi 0, %s60
    %s77 = sphi 0, %s61
    %s83 = sphi 0, %s85
    %s86 = sphi 0, %s83
    %s87 = sphi 0, %s86
    %s103 = sphi 0, %s87
    %s111 = sphi 0, %s113
    %s114 = sphi 0, %s111
    %s115 = sphi 0, %s114
    %s131 = sphi 0, %s115
  $region4: #{conv_bn_forward.1} parent=0 // loop_header_branch
    %12 = sbr.rel (%p10) target = $region8
  $region5: #{conv_bn_forward.1} parent=0 // loop_body
    %s14 = ssub.s32 %s9, 1
    %s15 = ssub.s32 %s9, 2
    %s22 = sadd.s32 1, %s17
    %p23 = scmp.ge.s32.totalorder %s22, 1
    %s24 = scalar_select %p23, 0, %s22
    %s25 = sadd.s32 1, %s16
    %s26 = scalar_select %p23, %s25, %s16
    %p27 = scmp.ge.s32.totalorder %s26, 2
    %s28 = scalar_select %p27, 0, %s26
    %s29 = ssub.s32 %s16, %s28
    %p30 = scmp.eq.s32.totalorder %s29, 0
    %s32 = sadd.s32 %s31, 1
    %s33 = scalar_select %p30, %s31, %s32
    %p36 = pneg %p30
    %p37 = scmp.eq.s32.totalorder %s9, 1
    %p38 = por %p36, %p37
    %p39 = scmp.ne.s32.totalorder %s31, %s34
    %p40 = scmp.eq.s32.totalorder %s9, 0
    %p41 = por %p39, %p40
    %p42 = scmp.ne.s32.totalorder %s31, %s34
    %p43 = scmp.eq.s32.totalorder %s14, 1
    %p44 = por %p42, %p43
    %p45 = scmp.ne.s32.totalorder %s34, %s35
    %p46 = scmp.eq.s32.totalorder %s14, 0
    %p47 = por %p45, %p46
    %p48 = scmp.ne.s32.totalorder %s34, %s35
    %p49 = scmp.eq.s32.totalorder %s15, 1
    %p50 = por %p48, %p49
    %p52 = scmp.ne.s32.totalorder %s35, %s51
    %p53 = scmp.eq.s32.totalorder %s15, 0
    %p54 = por %p52, %p53
    %s55 = ssub.s32 %s17, %s24
    %p56 = scmp.eq.s32.totalorder %s55, 0
    %s58 = sadd.s32 %s57, 1
    %s59 = scalar_select %p56, %s57, %s58
    %p62 = pneg %p56
    %p63 = scmp.eq.s32.totalorder %s9, 1
    %p64 = por %p62, %p63
    %p65 = scmp.ne.s32.totalorder %s57, %s60
    %p66 = scmp.eq.s32.totalorder %s9, 0
    %p67 = por %p65, %p66
    %p68 = scmp.ne.s32.totalorder %s57, %s60
    %p69 = scmp.eq.s32.totalorder %s14, 1
    %p70 = por %p68, %p69
    %p71 = scmp.ne.s32.totalorder %s60, %s61
    %p72 = scmp.eq.s32.totalorder %s14, 0
    %p73 = por %p71, %p72
    %p74 = scmp.ne.s32.totalorder %s60, %s61
    %p75 = scmp.eq.s32.totalorder %s15, 1
    %p76 = por %p74, %p75
    %p78 = scmp.ne.s32.totalorder %s61, %s77
    %p79 = scmp.eq.s32.totalorder %s15, 0
    %p80 = por %p78, %p79
    %s81 = ssub.s32 %s17, %s24
    %p82 = scmp.eq.s32.totalorder %s81, 0
    %s84 = sadd.s32 %s83, 1
    %s85 = scalar_select %p82, %s83, %s84
    %p88 = pneg %p82
    %p89 = scmp.eq.s32.totalorder %s9, 1
    %p90 = por %p88, %p89
    %p91 = scmp.ne.s32.totalorder %s83, %s86
    %p92 = scmp.eq.s32.totalorder %s9, 0
    %p93 = por %p91, %p92
    %p94 = scmp.ne.s32.totalorder %s83, %s86
    %p95 = scmp.eq.s32.totalorder %s14, 1
    %p96 = por %p94, %p95
    %p97 = scmp.ne.s32.totalorder %s86, %s87
    %p98 = scmp.eq.s32.totalorder %s14, 0
    %p99 = por %p97, %p98
    %p100 = scmp.ne.s32.totalorder %s86, %s87
    %p101 = scmp.eq.s32.totalorder %s15, 1
    %p102 = por %p100, %p101
    %p104 = scmp.ne.s32.totalorder %s87, %s103
    %p105 = scmp.eq.s32.totalorder %s15, 0
    %p106 = por %p104, %p105
    %s107 = ssub.s32 %s16, %s28
    %s108 = ssub.s32 %s17, %s24
    %s109 = sor.u32 %s107, %s108
    %p110 = scmp.eq.s32.totalorder %s109, 0
    %s112 = sadd.s32 %s111, 1
    %s113 = scalar_select %p110, %s111, %s112
    %p116 = pneg %p110
    %p117 = scmp.eq.s32.totalorder %s9, 1
    %p118 = por %p116, %p117
    %p119 = scmp.ne.s32.totalorder %s111, %s114
    %p120 = scmp.eq.s32.totalorder %s9, 0
    %p121 = por %p119, %p120
    %p122 = scmp.ne.s32.totalorder %s111, %s114
    %p123 = scmp.eq.s32.totalorder %s14, 1
    %p124 = por %p122, %p123
    %p125 = scmp.ne.s32.totalorder %s114, %s115
    %p126 = scmp.eq.s32.totalorder %s14, 0
    %p127 = por %p125, %p126
    %p128 = scmp.ne.s32.totalorder %s114, %s115
    %p129 = scmp.eq.s32.totalorder %s15, 1
    %p130 = por %p128, %p129
    %p132 = scmp.ne.s32.totalorder %s115, %s131
    %p133 = scmp.eq.s32.totalorder %s15, 0
    %p134 = por %p132, %p133
    %p135 = scmp.le.s32.totalorder 1, %s9
    %p136 = scmp.lt.s32.totalorder %s9, 3
    %p137 = pnand %p135, %p136
    %p138 = pneg %p137
    // Predicated region
    $region9: #{conv_bn_forward.1} parent=5 // pred_check
      _
    $region10: #{conv_bn_forward.1} parent=5 // pred_check_branch
      %140 = sbr.rel (%p137) target = $region12
    $region11: #{conv_bn_forward.1} parent=5 // pred_region
      %s141 = ssub.s32 %s9, 1
      // Predicated region
      $region13: #{conv_bn_forward.1} parent=11 // pred_check
        %p142 = pneg %p73
      $region14: #{conv_bn_forward.1} parent=11 // pred_check_branch
        %144 = sbr.rel (%p142) target = $region16
      $region15: #{conv_bn_forward.1} parent=11 // pred_region
        %p145 = scmp.lt.s32.totalorder %s19, 0
        %s146 = scalar_select %p145, %s19, 0
        %s147 = smul.addr %s146, 4
        %s148 = scalar_lea.vmem %s1, %s147
      $region16: #{conv_bn_forward.1} parent=11 // pred_fallthru
        _
      // Predicated region
      $region17: #{conv_bn_forward.1} parent=11 // pred_check
        %p149 = pneg %p99
      $region18: #{conv_bn_forward.1} parent=11 // pred_check_branch
        %151 = sbr.rel (%p149) target = $region20
      $region19: #{conv_bn_forward.1} parent=11 // pred_region
        %p152 = scmp.lt.s32.totalorder %s19, 0
        %s153 = scalar_select %p152, %s19, 0
        %s154 = scalar_lea.vmem %s2, %s153
      $region20: #{conv_bn_forward.1} parent=11 // pred_fallthru
        _
    $region12: #{conv_bn_forward.1} parent=5 // pred_fallthru
      _
    %p155 = scmp.lt.s32.totalorder %s9, 2
    // Predicated region
    $region21: #{conv_bn_forward.1} parent=5 // pred_check
      %p156 = pneg %p155
    $region22: #{conv_bn_forward.1} parent=5 // pred_check_branch
      %158 = sbr.rel (%p156) target = $region24
    $region23: #{conv_bn_forward.1} parent=5 // pred_region
      // Predicated region
      $region25: #{conv_bn_forward.1} parent=23 // pred_check
        %p159 = pneg %p41
      $region26: #{conv_bn_forward.1} parent=23 // pred_check_branch
        %161 = sbr.rel (%p159) target = $region28
      $region27: #{conv_bn_forward.1} parent=23 // pred_region
        %p162 = scmp.lt.s32.totalorder %s16, 1
        %s163 = scalar_select %p162, %s16, 1
        %s164 = smul.addr %s163, 36
        %s165 = smul.addr %s164, 4
        %s166 = scalar_lea.vmem %s0, %s165
      $region28: #{conv_bn_forward.1} parent=23 // pred_fallthru
        _
    $region24: #{conv_bn_forward.1} parent=5 // pred_fallthru
      _
    %p167 = scmp.le.s32.totalorder 1, %s9
    %p168 = scmp.lt.s32.totalorder %s9, 3
    %p169 = pnand %p167, %p168
    %p170 = pneg %p169
    // Predicated region
    $region29: #{conv_bn_forward.1} parent=5 // pred_check
      _
    $region30: #{conv_bn_forward.1} parent=5 // pred_check_branch
      %172 = sbr.rel (%p169) target = $region32
    $region31: #{conv_bn_forward.1} parent=5 // pred_region
      %s173 = ssub.s32 %s9, 1
      %p174 = scmp.lt.s32.totalorder %s18, 1
      %s175 = scalar_select %p174, %s18, 1
      %s176 = smul.addr %s175, 36
      %s177 = smul.addr %s176, 4
      %s178 = scalar_lea.vmem %s0, %s177
      %p179 = pneg %p47
      %p180 = pneg %p44
      %p181 = scmp.lt.s32.totalorder %s19, 0
      %s182 = scalar_select %p181, %s19, 0
      %s183 = smul.addr %s182, 4
      %s184 = scalar_lea.vmem %s1, %s183
      %p185 = pneg %p73
      %p186 = pneg %p70
      %p187 = scmp.lt.s32.totalorder %s19, 0
      %s188 = scalar_select %p187, %s19, 0
      %s189 = scalar_lea.vmem %s2, %s188
      %p190 = pneg %p99
      %p191 = pneg %p96
      %p192 = pneg %p127
      %p193 = pneg %p124
      %p194 = scmp.lt.s32.totalorder %s18, 1
      %s195 = scalar_select %p194, %s18, 1
      %p196 = scmp.lt.s32.totalorder %s19, 0
      %s197 = scalar_select %p196, %s19, 0
      %s198 = smul.addr %s195, 32
      %s199 = sadd.s32 %s197, %s198
      %s200 = smul.addr %s199, 4
      %s201 = scalar_lea.vmem %s3, %s200
      %p202 = scmp.lt.s32.totalorder %s18, 1
      %s203 = scalar_select %p202, %s18, 1
      %s204 = smul.addr %s203, 36
      %s205 = smul.addr %s204, 4
      %s206 = scalar_lea.vmem %s0, %s205
      %p207 = scmp.lt.s32.totalorder %s19, 0
      %s208 = scalar_select %p207, %s19, 0
      %s209 = smul.addr %s208, 4
      %s210 = scalar_lea.vmem %s1, %s209
      %p211 = scmp.lt.s32.totalorder %s19, 0
      %s212 = scalar_select %p211, %s19, 0
      %s213 = scalar_lea.vmem %s2, %s212
      %p214 = scmp.lt.s32.totalorder %s18, 1
      %s215 = scalar_select %p214, %s18, 1
      %p216 = scmp.lt.s32.totalorder %s19, 0
      %s217 = scalar_select %p216, %s19, 0
      %s218 = smul.addr %s215, 32
      %s219 = sadd.s32 %s217, %s218
      %s220 = smul.addr %s219, 4
      %s221 = scalar_lea.vmem %s3, %s220
      %v223 = vld [vmem:[%s213] sm:$0x1]
      %v224 = vld [vmem:[%s206] sm:$0xf]
      %v225 = vld [vmem:[%s206 + $0x4] sm:$0xf]
      %v226 = vld [vmem:[%s206 + $0x8] sm:$0xf]
      %v227 = vld [vmem:[%s206 + $0xc] sm:$0xf]
      %v228 = vld [vmem:[%s206 + $0x10] sm:$0xf]
      %v229 = vld [vmem:[%s206 + $0x14] sm:$0xf]
      %v230 = vld [vmem:[%s206 + $0x18] sm:$0xf]
      %v231 = vld [vmem:[%s206 + $0x1c] sm:$0xf]
      %v232 = vld [vmem:[%s206 + $0x20] sm:$0xf]
      %v233 = vld [vmem:[%s206 + $0x24] sm:$0xf]
      %v234 = vld [vmem:[%s206 + $0x28] sm:$0xf]
      %v235 = vld [vmem:[%s206 + $0x2c] sm:$0xf]
      %v236 = vld [vmem:[%s206 + $0x30] sm:$0xf]
      %v237 = vld [vmem:[%s206 + $0x34] sm:$0xf]
      %v238 = vld [vmem:[%s206 + $0x38] sm:$0xf]
      %v239 = vld [vmem:[%s206 + $0x3c] sm:$0xf]
      %v240 = vld [vmem:[%s210] sm:$0xf]
      %v241 = vld [vmem:[%s210 + $0x4] sm:$0x3]
      %v242 = vld [vmem:[%s206 + $0x40] sm:$0xf]
      %v243 = vld [vmem:[%s206 + $0x44] sm:$0xf]
      %s244 = scalar_lea.vmem %s210, 8
      %v245 = vld [vmem:[%s244] sm:$0xf]
      %v246 = vld [vmem:[%s244 + $0x4] sm:$0x3]
      %v263 = vunpack.c.l.b16 %v226
      %v264 = vunpack.c.l.b16 %v227
      %v265 = vunpack.c.l.b16 %v228
      %v266 = vunpack.c.l.b16 %v229
      %v267 = vunpack.c.l.b16 %v230
      %v268 = vunpack.c.l.b16 %v231
      %v269 = vunpack.c.l.b16 %v232
      %v270 = vunpack.c.l.b16 %v233
      %v271 = vunpack.c.l.b16 %v234
      %v272 = vunpack.c.l.b16 %v235
      %v273 = vunpack.c.l.b16 %v236
      %v274 = vunpack.c.l.b16 %v237
      %v275 = vunpack.c.l.b16 %v238
      %v276 = vunpack.c.l.b16 %v239
      %v277 = vunpack.c.l.b16 %v242
      %v278 = vunpack.c.l.b16 %v243
      %v279 = vpack.c.b16 %v264, %v263
      %v280 = vpack.c.b16 %v266, %v265
      %v281 = vpack.c.b16 %v268, %v267
      %v282 = vpack.c.b16 %v270, %v269
      %v283 = vpack.c.b16 %v272, %v271
      %v284 = vpack.c.b16 %v274, %v273
      %v285 = vpack.c.b16 %v276, %v275
      %v286 = vpack.c.b16 %v278, %v277
      %v289 = vunpack.c.l.b16 %v245
      %v290 = vunpack.c.l.b16 %v246
      %v291 = vpack.c.b16 %v290, %v289
      %vm292 = vcmask 97280
      %v294 = vsel %vm292, %v279, 0
      %v297 = vsel %vm292, %v280, 0
      %v300 = vsel %vm292, %v281, 0
      %v303 = vsel %vm292, %v282, 0
      %v306 = vsel %vm292, %v283, 0
      %v309 = vsel %vm292, %v284, 0
      %v312 = vsel %vm292, %v285, 0
      %v315 = vsel %vm292, %v286, 0
      %vm317 = vcmask 1045504
      %v319 = vsel %vm317, %v291, 0
      %321 = vmatprep.subr.bf16.mxu0 0
      %322 = vmatpush1.bf16.msra.mxu0 %v319
      %323 = vmatprep.subr.bf16.mxu0 0
      %324 = vmatpush1.bf16.msra.mxu0 0
      %325 = vmatprep.subr.bf16.mxu0 0
      %326 = vmatpush1.bf16.msra.mxu0 0
      %327 = vmatprep.subr.bf16.mxu0 0
      %328 = vmatpush1.bf16.msra.mxu0 0
      %329 = vmatprep.subr.bf16.mxu0 0
      %330 = vmatpush1.bf16.msra.mxu0 0
      %331 = vmatprep.subr.bf16.mxu0 0
      %332 = vmatpush1.bf16.msra.mxu0 0
      %333 = vmatprep.subr.bf16.mxu0 0
      %334 = vmatpush1.bf16.msra.mxu0 0
      %335 = vmatprep.subr.bf16.mxu0 0
      %336 = vmatpush1.bf16.msra.mxu0 0
      %337 = vmatprep.subr.bf16.mxu0 0
      %338 = vmatpush1.bf16.msra.mxu0 0
      %339 = vmatprep.subr.bf16.mxu0 0
      %340 = vmatpush1.bf16.msra.mxu0 0
      %341 = vmatprep.subr.bf16.mxu0 0
      %342 = vmatpush1.bf16.msra.mxu0 0
      %343 = vmatprep.subr.bf16.mxu0 0
      %344 = vmatpush1.bf16.msra.mxu0 0
      %345 = vmatprep.subr.bf16.mxu0 0
      %346 = vmatpush1.bf16.msra.mxu0 0
      %347 = vmatprep.subr.bf16.mxu0 0
      %348 = vmatpush1.bf16.msra.mxu0 0
      %349 = vmatprep.subr.bf16.mxu0 0
      %350 = vmatpush1.bf16.msra.mxu0 0
      %351 = vmatprep.subr.bf16.mxu0 0
      %352 = vmatpush1.bf16.msra.mxu0 0
      %353 = vmatprep.mubr.bf16.mxu0 0
      %354 = vmatmul.mubr.bf16.gmra.mrb[0].mxu0 %v294
      %v355 = vpop.f32.mrb[0].mxu0
      %v356 = vadd.f32 0.0, %v355
      %v357 = vpop.f32.mrb[0].mxu0
      %v358 = vpop.f32.mrb[0].mxu0
      %v359 = vadd.f32 0.0, %v358
      %v360 = vpop.f32.mrb[0].mxu0
      %361 = vmatprep.mubr.bf16.mxu0 0
      %362 = vmatmul.mubr.bf16.gmra.mrb[0].mxu0 %v297
      %v363 = vpop.f32.mrb[0].mxu0
      %v364 = vadd.f32 0.0, %v363
      %v365 = vpop.f32.mrb[0].mxu0
      %v366 = vpop.f32.mrb[0].mxu0
      %v367 = vadd.f32 0.0, %v366
      %v368 = vpop.f32.mrb[0].mxu0
      %369 = vmatprep.mubr.bf16.mxu0 0
      %370 = vmatmul.mubr.bf16.gmra.mrb[0].mxu0 %v300
      %v371 = vpop.f32.mrb[0].mxu0
      %v372 = vadd.f32 0.0, %v371
      %v373 = vpop.f32.mrb[0].mxu0
      %v374 = vpop.f32.mrb[0].mxu0
      %v375 = vadd.f32 0.0, %v374
      %v376 = vpop.f32.mrb[0].mxu0
      %377 = vmatprep.mubr.bf16.mxu0 0
      %378 = vmatmul.mubr.bf16.gmra.mrb[0].mxu0 %v303
      %v379 = vpop.f32.mrb[0].mxu0
      %v380 = vadd.f32 0.0, %v379
      %v381 = vpop.f32.mrb[0].mxu0
      %v382 = vpop.f32.mrb[0].mxu0
      %v383 = vadd.f32 0.0, %v382
      %v384 = vpop.f32.mrb[0].mxu0
      %385 = vmatprep.mubr.bf16.mxu0 0
      %386 = vmatmul.mubr.bf16.gmra.mrb[0].mxu0 %v306
      %v387 = vpop.f32.mrb[0].mxu0
      %v388 = vadd.f32 0.0, %v387
      %v389 = vpop.f32.mrb[0].mxu0
      %v390 = vpop.f32.mrb[0].mxu0
      %v391 = vadd.f32 0.0, %v390
      %v392 = vpop.f32.mrb[0].mxu0
      %393 = vmatprep.mubr.bf16.mxu0 0
      %394 = vmatmul.mubr.bf16.gmra.mrb[0].mxu0 %v309
      %v395 = vpop.f32.mrb[0].mxu0
      %v396 = vadd.f32 0.0, %v395
      %v397 = vpop.f32.mrb[0].mxu0
      %v398 = vpop.f32.mrb[0].mxu0
      %v399 = vadd.f32 0.0, %v398
      %v400 = vpop.f32.mrb[0].mxu0
      %401 = vmatprep.mubr.bf16.mxu0 0
      %402 = vmatmul.mubr.bf16.gmra.mrb[0].mxu0 %v312
      %v403 = vpop.f32.mrb[0].mxu0
      %v404 = vadd.f32 0.0, %v403
      %v405 = vpop.f32.mrb[0].mxu0
      %v406 = vpop.f32.mrb[0].mxu0
      %v407 = vadd.f32 0.0, %v406
      %v408 = vpop.f32.mrb[0].mxu0
      %409 = vmatprep.mubr.bf16.mxu0 0
      %410 = vmatmul.mubr.bf16.gmra.mrb[0].mxu0 %v315
      %v411 = vpop.f32.mrb[0].mxu0
      %v412 = vadd.f32 0.0, %v411
      %v413 = vpop.f32.mrb[0].mxu0
      %v414 = vpop.f32.mrb[0].mxu0
      %v415 = vadd.f32 0.0, %v414
      %v416 = vpop.f32.mrb[0].mxu0
      %417 = vdwg.mxu0
      %v420 = vunpack.c.l.b16 %v224
      %v421 = vunpack.c.l.b16 %v225
      %v422 = vpack.c.b16 %v421, %v420
      %v425 = vunpack.c.l.b16 %v240
      %v426 = vunpack.c.l.b16 %v241
      %v427 = vpack.c.b16 %v426, %v425
      %v429 = vsel %vm292, %v422, 0
      %v432 = vsel %vm317, %v427, 0
      %434 = vmatprep.subr.bf16.mxu0 0
      %435 = vmatpush1.bf16.msra.mxu0 %v432
      %436 = vmatprep.subr.bf16.mxu0 0
      %437 = vmatpush1.bf16.msra.mxu0 0
      %438 = vmatprep.subr.bf16.mxu0 0
      %439 = vmatpush1.bf16.msra.mxu0 0
      %440 = vmatprep.subr.bf16.mxu0 0
      %441 = vmatpush1.bf16.msra.mxu0 0
      %442 = vmatprep.subr.bf16.mxu0 0
      %443 = vmatpush1.bf16.msra.mxu0 0
      %444 = vmatprep.subr.bf16.mxu0 0
      %445 = vmatpush1.bf16.msra.mxu0 0
      %446 = vmatprep.subr.bf16.mxu0 0
      %447 = vmatpush1.bf16.msra.mxu0 0
      %448 = vmatprep.subr.bf16.mxu0 0
      %449 = vmatpush1.bf16.msra.mxu0 0
      %450 = vmatprep.subr.bf16.mxu0 0
      %451 = vmatpush1.bf16.msra.mxu0 0
      %452 = vmatprep.subr.bf16.mxu0 0
      %453 = vmatpush1.bf16.msra.mxu0 0
      %454 = vmatprep.subr.bf16.mxu0 0
      %455 = vmatpush1.bf16.msra.mxu0 0
      %456 = vmatprep.subr.bf16.mxu0 0
      %457 = vmatpush1.bf16.msra.mxu0 0
      %458 = vmatprep.subr.bf16.mxu0 0
      %459 = vmatpush1.bf16.msra.mxu0 0
      %460 = vmatprep.subr.bf16.mxu0 0
      %461 = vmatpush1.bf16.msra.mxu0 0
      %462 = vmatprep.subr.bf16.mxu0 0
      %463 = vmatpush1.bf16.msra.mxu0 0
      %464 = vmatprep.subr.bf16.mxu0 0
      %465 = vmatpush1.bf16.msra.mxu0 0
      %466 = vmatprep.mubr.bf16.mxu0 0
      %467 = vmatmul.mubr.bf16.gmra.mrb[0].mxu0 %v429
      %v468 = vpop.f32.mrb[0].mxu0
      %v469 = vadd.f32 %v356, %v468
      %v470 = vpop.f32.mrb[0].mxu0
      %v471 = vpop.f32.mrb[0].mxu0
      %v472 = vadd.f32 %v359, %v471
      %v473 = vpop.f32.mrb[0].mxu0
      %474 = vmatprep.mubr.bf16.mxu0 0
      %475 = vmatmul.mubr.bf16.gmra.mrb[0].mxu0 %v294
      %v476 = vpop.f32.mrb[0].mxu0
      %v477 = vadd.f32 %v364, %v476
      %v478 = vpop.f32.mrb[0].mxu0
      %v479 = vpop.f32.mrb[0].mxu0
      %v480 = vadd.f32 %v367, %v479
      %v481 = vpop.f32.mrb[0].mxu0
      %482 = vmatprep.mubr.bf16.mxu0 0
      %483 = vmatmul.mubr.bf16.gmra.mrb[0].mxu0 %v297
      %v484 = vpop.f32.mrb[0].mxu0
      %v485 = vadd.f32 %v372, %v484
      %v486 = vpop.f32.mrb[0].mxu0
      %v487 = vpop.f32.mrb[0].mxu0
      %v488 = vadd.f32 %v375, %v487
      %v489 = vpop.f32.mrb[0].mxu0
      %490 = vmatprep.mubr.bf16.mxu0 0
      %491 = vmatmul.mubr.bf16.gmra.mrb[0].mxu0 %v300
      %v492 = vpop.f32.mrb[0].mxu0
      %v493 = vadd.f32 %v380, %v492
      %v494 = vpop.f32.mrb[0].mxu0
      %v495 = vpop.f32.mrb[0].mxu0
      %v496 = vadd.f32 %v383, %v495
      %v497 = vpop.f32.mrb[0].mxu0
      %498 = vmatprep.mubr.bf16.mxu0 0
      %499 = vmatmul.mubr.bf16.gmra.mrb[0].mxu0 %v303
      %v500 = vpop.f32.mrb[0].mxu0
      %v501 = vadd.f32 %v388, %v500
      %v502 = vpop.f32.mrb[0].mxu0
      %v503 = vpop.f32.mrb[0].mxu0
      %v504 = vadd.f32 %v391, %v503
      %v505 = vpop.f32.mrb[0].mxu0
      %506 = vmatprep.mubr.bf16.mxu0 0
      %507 = vmatmul.mubr.bf16.gmra.mrb[0].mxu0 %v306
      %v508 = vpop.f32.mrb[0].mxu0
      %v509 = vadd.f32 %v396, %v508
      %v510 = vpop.f32.mrb[0].mxu0
      %v511 = vpop.f32.mrb[0].mxu0
      %v512 = vadd.f32 %v399, %v511
      %v513 = vpop.f32.mrb[0].mxu0
      %514 = vmatprep.mubr.bf16.mxu0 0
      %515 = vmatmul.mubr.bf16.gmra.mrb[0].mxu0 %v309
      %v516 = vpop.f32.mrb[0].mxu0
      %v517 = vadd.f32 %v404, %v516
      %v518 = vpop.f32.mrb[0].mxu0
      %v519 = vpop.f32.mrb[0].mxu0
      %v520 = vadd.f32 %v407, %v519
      %v521 = vpop.f32.mrb[0].mxu0
      %522 = vmatprep.mubr.bf16.mxu0 0
      %523 = vmatmul.mubr.bf16.gmra.mrb[0].mxu0 %v312
      %v524 = vpop.f32.mrb[0].mxu0
      %v525 = vadd.f32 %v412, %v524
      %v526 = vpop.f32.mrb[0].mxu0
      %v527 = vpop.f32.mrb[0].mxu0
      %v528 = vadd.f32 %v415, %v527
      %v529 = vpop.f32.mrb[0].mxu0
      %530 = vdwg.mxu0
      %v531 = vld [vmem:[%s206 + $0x10] sm:$0xf]
      %v532 = vld [vmem:[%s206 + $0x14] sm:$0xf]
      %v533 = vld [vmem:[%s206 + $0x18] sm:$0xf]
      %v534 = vld [vmem:[%s206 + $0x1c] sm:$0xf]
      %v535 = vld [vmem:[%s206 + $0x20] sm:$0xf]
      %v536 = vld [vmem:[%s206 + $0x24] sm:$0xf]
      %v537 = vld [vmem:[%s206 + $0x28] sm:$0xf]
      %v538 = vld [vmem:[%s206 + $0x2c] sm:$0xf]
      %v539 = vld [vmem:[%s206 + $0x30] sm:$0xf]
      %v540 = vld [vmem:[%s206 + $0x34] sm:$0xf]
      %v541 = vld [vmem:[%s206 + $0x38] sm:$0xf]
      %v542 = vld [vmem:[%s206 + $0x3c] sm:$0xf]
      %v543 = vld [vmem:[%s206 + $0x40] sm:$0xf]
      %v544 = vld [vmem:[%s206 + $0x44] sm:$0xf]
      %v545 = vld [vmem:[%s206 + $0x48] sm:$0xf]
      %v546 = vld [vmem:[%s206 + $0x4c] sm:$0xf]
      %s547 = scalar_lea.vmem %s210, 16
      %v548 = vld [vmem:[%s547] sm:$0xf]
      %v549 = vld [vmem:[%s547 + $0x4] sm:$0x3]
      %v566 = vunpack.c.l.b16 %v531
      %v567 = vunpack.c.l.b16 %v532
      %v568 = vunpack.c.l.b16 %v533
      %v569 = vunpack.c.l.b16 %v534
      %v570 = vunpack.c.l.b16 %v535
      %v571 = vunpack.c.l.b16 %v536
      %v572 = vunpack.c.l.b16 %v537
      %v573 = vunpack.c.l.b16 %v538
      %v574 = vunpack.c.l.b16 %v539
      %v575 = vunpack.c.l.b16 %v540
      %v576 = vunpack.c.l.b16 %v541
      %v577 = vunpack.c.l.b16 %v542
      %v578 = vunpack.c.l.b16 %v543
      %v579 = vunpack.c.l.b16 %v544
      %v580 = vunpack.c.l.b16 %v545
      %v581 = vunpack.c.l.b16 %v546
      %v582 = vpack.c.b16 %v567, %v566
      %v583 = vpack.c.b16 %v569, %v568
      %v584 = vpack.c.b16 %v571, %v570
      %v585 = vpack.c.b16 %v573, %v572
      %v586 = vpack.c.b16 %v575, %v574
      %v587 = vpack.c.b16 %v577, %v576
      %v588 = vpack.c.b16 %v579, %v578
      %v589 = vpack.c.b16 %v581, %v580
      %v592 = vunpack.c.l.b16 %v548
      %v593 = vunpack.c.l.b16 %v549
      %v594 = vpack.c.b16 %v593, %v592
      %v596 = vsel %vm292, %v582, 0
      %v599 = vsel %vm292, %v583, 0
      %v602 = vsel %vm292, %v584, 0
      %v605 = vsel %vm292, %v585, 0
      %v608 = vsel %vm292, %v586, 0
      %v611 = vsel %vm292, %v587, 0
      %v614 = vsel %vm292, %v588, 0
      %v617 = vsel %vm292, %v589, 0
      %v620 = vsel %vm317, %v594, 0
      %622 = vmatprep.subr.bf16.mxu0 0
      %623 = vmatpush1.bf16.msra.mxu0 %v620
      %624 = vmatprep.subr.bf16.mxu0 0
      %625 = vmatpush1.bf16.msra.mxu0 0
      %626 = vmatprep.subr.bf16.mxu0 0
      %627 = vmatpush1.bf16.msra.mxu0 0
      %628 = vmatprep.subr.bf16.mxu0 0
      %629 = vmatpush1.bf16.msra.mxu0 0
      %630 = vmatprep.subr.bf16.mxu0 0
      %631 = vmatpush1.bf16.msra.mxu0 0
      %632 = vmatprep.subr.bf16.mxu0 0
      %633 = vmatpush1.bf16.msra.mxu0 0
      %634 = vmatprep.subr.bf16.mxu0 0
      %635 = vmatpush1.bf16.msra.mxu0 0
      %636 = vmatprep.subr.bf16.mxu0 0
      %637 = vmatpush1.bf16.msra.mxu0 0
      %638 = vmatprep.subr.bf16.mxu0 0
      %639 = vmatpush1.bf16.msra.mxu0 0
      %640 = vmatprep.subr.bf16.mxu0 0
      %641 = vmatpush1.bf16.msra.mxu0 0
      %642 = vmatprep.subr.bf16.mxu0 0
      %643 = vmatpush1.bf16.msra.mxu0 0
      %644 = vmatprep.subr.bf16.mxu0 0
      %645 = vmatpush1.bf16.msra.mxu0 0
      %646 = vmatprep.subr.bf16.mxu0 0
      %647 = vmatpush1.bf16.msra.mxu0 0
      %648 = vmatprep.subr.bf16.mxu0 0
      %649 = vmatpush1.bf16.msra.mxu0 0
      %650 = vmatprep.subr.bf16.mxu0 0
      %651 = vmatpush1.bf16.msra.mxu0 0
      %652 = vmatprep.subr.bf16.mxu0 0
      %653 = vmatpush1.bf16.msra.mxu0 0
      %654 = vmatprep.mubr.bf16.mxu0 0
      %655 = vmatmul.mubr.bf16.gmra.mrb[0].mxu0 %v596
      %v656 = vpop.f32.mrb[0].mxu0
      %v657 = vadd.f32 0.0, %v656
      %v658 = vpop.f32.mrb[0].mxu0
      %v659 = vpop.f32.mrb[0].mxu0
      %v660 = vadd.f32 0.0, %v659
      %v661 = vpop.f32.mrb[0].mxu0
      %662 = vmatprep.mubr.bf16.mxu0 0
      %663 = vmatmul.mubr.bf16.gmra.mrb[0].mxu0 %v599
      %v664 = vpop.f32.mrb[0].mxu0
      %v665 = vadd.f32 0.0, %v664
      %v666 = vpop.f32.mrb[0].mxu0
      %v667 = vpop.f32.mrb[0].mxu0
      %v668 = vadd.f32 0.0, %v667
      %v669 = vpop.f32.mrb[0].mxu0
      %670 = vmatprep.mubr.bf16.mxu0 0
      %671 = vmatmul.mubr.bf16.gmra.mrb[0].mxu0 %v602
      %v672 = vpop.f32.mrb[0].mxu0
      %v673 = vadd.f32 0.0, %v672
      %v674 = vpop.f32.mrb[0].mxu0
      %v675 = vpop.f32.mrb[0].mxu0
      %v676 = vadd.f32 0.0, %v675
      %v677 = vpop.f32.mrb[0].mxu0
      %678 = vmatprep.mubr.bf16.mxu0 0
      %679 = vmatmul.mubr.bf16.gmra.mrb[0].mxu0 %v605
      %v680 = vpop.f32.mrb[0].mxu0
      %v681 = vadd.f32 0.0, %v680
      %v682 = vpop.f32.mrb[0].mxu0
      %v683 = vpop.f32.mrb[0].mxu0
      %v684 = vadd.f32 0.0, %v683
      %v685 = vpop.f32.mrb[0].mxu0
      %686 = vmatprep.mubr.bf16.mxu0 0
      %687 = vmatmul.mubr.bf16.gmra.mrb[0].mxu0 %v608
      %v688 = vpop.f32.mrb[0].mxu0
      %v689 = vadd.f32 0.0, %v688
      %v690 = vpop.f32.mrb[0].mxu0
      %v691 = vpop.f32.mrb[0].mxu0
      %v692 = vadd.f32 0.0, %v691
      %v693 = vpop.f32.mrb[0].mxu0
      %694 = vmatprep.mubr.bf16.mxu0 0
      %695 = vmatmul.mubr.bf16.gmra.mrb[0].mxu0 %v611
      %v696 = vpop.f32.mrb[0].mxu0
      %v697 = vadd.f32 0.0, %v696
      %v698 = vpop.f32.mrb[0].mxu0
      %v699 = vpop.f32.mrb[0].mxu0
      %v700 = vadd.f32 0.0, %v699
      %v701 = vpop.f32.mrb[0].mxu0
      %702 = vmatprep.mubr.bf16.mxu0 0
      %703 = vmatmul.mubr.bf16.gmra.mrb[0].mxu0 %v614
      %v704 = vpop.f32.mrb[0].mxu0
      %v705 = vadd.f32 0.0, %v704
      %v706 = vpop.f32.mrb[0].mxu0
      %v707 = vpop.f32.mrb[0].mxu0
      %v708 = vadd.f32 0.0, %v707
      %v709 = vpop.f32.mrb[0].mxu0
      %710 = vmatprep.mubr.bf16.mxu0 0
      %711 = vmatmul.mubr.bf16.gmra.mrb[0].mxu0 %v617
      %v712 = vpop.f32.mrb[0].mxu0
      %v713 = vadd.f32 0.0, %v712
      %v714 = vpop.f32.mrb[0].mxu0
      %v715 = vpop.f32.mrb[0].mxu0
      %v716 = vadd.f32 0.0, %v715
      %v717 = vpop.f32.mrb[0].mxu0
      %718 = vdwg.mxu0
      %v719 = vadd.f32 %v469, %v657
      %v720 = vadd.f32 %v472, %v660
      %v721 = vadd.f32 %v477, %v665
      %v722 = vadd.f32 %v480, %v668
      %v723 = vadd.f32 %v485, %v673
      %v724 = vadd.f32 %v488, %v676
      %v725 = vadd.f32 %v493, %v681
      %v726 = vadd.f32 %v496, %v684
      %v727 = vadd.f32 %v501, %v689
      %v728 = vadd.f32 %v504, %v692
      %v729 = vadd.f32 %v509, %v697
      %v730 = vadd.f32 %v512, %v700
      %v731 = vadd.f32 %v517, %v705
      %v732 = vadd.f32 %v520, %v708
      %v733 = vadd.f32 %v525, %v713
      %v734 = vadd.f32 %v528, %v716
      %v736 = vlaneseq
      %v737 = vshrl.u32 %v736, 7
      %v738 = vsub.s32 0, %v737
      %v739 = vrot.slane %v223, %v738
      %v741 = vadd.f32 %v719, %v739
      %v742 = vadd.f32 %v720, %v739
      %v743 = vadd.f32 %v721, %v739
      %v744 = vadd.f32 %v722, %v739
      %v745 = vadd.f32 %v723, %v739
      %v746 = vadd.f32 %v724, %v739
      %v747 = vadd.f32 %v725, %v739
      %v748 = vadd.f32 %v726, %v739
      %v749 = vadd.f32 %v727, %v739
      %v750 = vadd.f32 %v728, %v739
      %v751 = vadd.f32 %v729, %v739
      %v752 = vadd.f32 %v730, %v739
      %v753 = vadd.f32 %v731, %v739
      %v754 = vadd.f32 %v732, %v739
      %v755 = vadd.f32 %v733, %v739
      %v756 = vadd.f32 %v734, %v739
      %v757 = vpack.c.bf16 %v742, %v741
      %v758 = vpack.c.bf16 %v744, %v743
      %v759 = vpack.c.bf16 %v746, %v745
      %v760 = vpack.c.bf16 %v748, %v747
      %v761 = vpack.c.bf16 %v750, %v749
      %v762 = vpack.c.bf16 %v752, %v751
      %v763 = vpack.c.bf16 %v754, %v753
      %v764 = vpack.c.bf16 %v756, %v755
      %v773 = vunpack.c.l.b16 %v757
      %v774 = vunpack.c.h.b16 %v757
      %v775 = vunpack.c.l.b16 %v758
      %v776 = vunpack.c.h.b16 %v758
      %v777 = vunpack.c.l.b16 %v759
      %v778 = vunpack.c.h.b16 %v759
      %v779 = vunpack.c.l.b16 %v760
      %v780 = vunpack.c.h.b16 %v760
      %v781 = vunpack.c.l.b16 %v761
      %v782 = vunpack.c.h.b16 %v761
      %v783 = vunpack.c.l.b16 %v762
      %v784 = vunpack.c.h.b16 %v762
      %v785 = vunpack.c.l.b16 %v763
      %v786 = vunpack.c.h.b16 %v763
      %v787 = vunpack.c.l.b16 %v764
      %v788 = vunpack.c.h.b16 %v764
      %v789 = vpack.c.b16 %v773, %v773
      %v790 = vpack.c.b16 %v774, %v774
      %v791 = vpack.c.b16 %v775, %v775
      %v792 = vpack.c.b16 %v776, %v776
      %v793 = vpack.c.b16 %v777, %v777
      %v794 = vpack.c.b16 %v778, %v778
      %v795 = vpack.c.b16 %v779, %v779
      %v796 = vpack.c.b16 %v780, %v780
      %v797 = vpack.c.b16 %v781, %v781
      %v798 = vpack.c.b16 %v782, %v782
      %v799 = vpack.c.b16 %v783, %v783
      %v800 = vpack.c.b16 %v784, %v784
      %v801 = vpack.c.b16 %v785, %v785
      %v802 = vpack.c.b16 %v786, %v786
      %v803 = vpack.c.b16 %v787, %v787
      %v804 = vpack.c.b16 %v788, %v788
      %821 = vst [vmem:[%s221] sm:$0xf] %v789
      %822 = vst [vmem:[%s221 + $0x4] sm:$0xf] %v790
      %823 = vst [vmem:[%s221 + $0x8] sm:$0xf] %v791
      %824 = vst [vmem:[%s221 + $0xc] sm:$0xf] %v792
      %825 = vst [vmem:[%s221 + $0x10] sm:$0xf] %v793
      %826 = vst [vmem:[%s221 + $0x14] sm:$0xf] %v794
      %827 = vst [vmem:[%s221 + $0x18] sm:$0xf] %v795
      %828 = vst [vmem:[%s221 + $0x1c] sm:$0xf] %v796
      %829 = vst [vmem:[%s221 + $0x20] sm:$0xf] %v797
      %830 = vst [vmem:[%s221 + $0x24] sm:$0xf] %v798
      %831 = vst [vmem:[%s221 + $0x28] sm:$0xf] %v799
      %832 = vst [vmem:[%s221 + $0x2c] sm:$0xf] %v800
      %833 = vst [vmem:[%s221 + $0x30] sm:$0xf] %v801
      %834 = vst [vmem:[%s221 + $0x34] sm:$0xf] %v802
      %835 = vst [vmem:[%s221 + $0x38] sm:$0xf] %v803
      %836 = vst [vmem:[%s221 + $0x3c] sm:$0xf] %v804
      %v837 = vld [vmem:[%s206 + $0x40] sm:$0xf]
      %v838 = vld [vmem:[%s206 + $0x44] sm:$0xf]
      %v839 = vld [vmem:[%s206 + $0x48] sm:$0xf]
      %v840 = vld [vmem:[%s206 + $0x4c] sm:$0xf]
      %v841 = vld [vmem:[%s206 + $0x50] sm:$0xf]
      %v842 = vld [vmem:[%s206 + $0x54] sm:$0xf]
      %v843 = vld [vmem:[%s206 + $0x58] sm:$0xf]
      %v844 = vld [vmem:[%s206 + $0x5c] sm:$0xf]
      %v845 = vld [vmem:[%s206 + $0x60] sm:$0xf]
      %v846 = vld [vmem:[%s206 + $0x64] sm:$0xf]
      %v847 = vld [vmem:[%s206 + $0x68] sm:$0xf]
      %v848 = vld [vmem:[%s206 + $0x6c] sm:$0xf]
      %v849 = vld [vmem:[%s206 + $0x70] sm:$0xf]
      %v850 = vld [vmem:[%s206 + $0x74] sm:$0xf]
      %v851 = vld [vmem:[%s206 + $0x78] sm:$0xf]
      %v852 = vld [vmem:[%s206 + $0x7c] sm:$0xf]
      %v853 = vld [vmem:[%s210] sm:$0xf]
      %v854 = vld [vmem:[%s210 + $0x4] sm:$0x3]
      %v855 = vld [vmem:[%s206 + $0x80] sm:$0xf]
      %v856 = vld [vmem:[%s206 + $0x84] sm:$0xf]
      %v857 = vld [vmem:[%s244] sm:$0xf]
      %v858 = vld [vmem:[%s244 + $0x4] sm:$0x3]
      %v875 = vunpack.c.l.b16 %v839
      %v876 = vunpack.c.l.b16 %v840
      %v877 = vunpack.c.l.b16 %v841
      %v878 = vunpack.c.l.b16 %v842
      %v879 = vunpack.c.l.b16 %v843
      %v880 = vunpack.c.l.b16 %v844
      %v881 = vunpack.c.l.b16 %v845
      %v882 = vunpack.c.l.b16 %v846
      %v883 = vunpack.c.l.b16 %v847
      %v884 = vunpack.c.l.b16 %v848
      %v885 = vunpack.c.l.b16 %v849
      %v886 = vunpack.c.l.b16 %v850
      %v887 = vunpack.c.l.b16 %v851
      %v888 = vunpack.c.l.b16 %v852
      %v889 = vunpack.c.l.b16 %v855
      %v890 = vunpack.c.l.b16 %v856
      %v891 = vpack.c.b16 %v876, %v875
      %v892 = vpack.c.b16 %v878, %v877
      %v893 = vpack.c.b16 %v880, %v879
      %v894 = vpack.c.b16 %v882, %v881
      %v895 = vpack.c.b16 %v884, %v883
      %v896 = vpack.c.b16 %v886, %v885
      %v897 = vpack.c.b16 %v888, %v887
      %v898 = vpack.c.b16 %v890, %v889
      %v901 = vunpack.c.l.b16 %v857
      %v902 = vunpack.c.l.b16 %v858
      %v903 = vpack.c.b16 %v902, %v901
      %v905 = vsel %vm292, %v891, 0
      %v908 = vsel %vm292, %v892, 0
      %v911 = vsel %vm292, %v893, 0
      %v914 = vsel %vm292, %v894, 0
      %v917 = vsel %vm292, %v895, 0
      %v920 = vsel %vm292, %v896, 0
      %v923 = vsel %vm292, %v897, 0
      %v926 = vsel %vm292, %v898, 0
      %v929 = vsel %vm317, %v903, 0
      %931 = vmatprep.subr.bf16.mxu0 0
      %932 = vmatpush1.bf16.msra.mxu0 %v929
      %933 = vmatprep.subr.bf16.mxu0 0
      %934 = vmatpush1.bf16.msra.mxu0 0
      %935 = vmatprep.subr.bf16.mxu0 0
      %936 = vmatpush1.bf16.msra.mxu0 0
      %937 = vmatprep.subr.bf16.mxu0 0
      %938 = vmatpush1.bf16.msra.mxu0 0
      %939 = vmatprep.subr.bf16.mxu0 0
      %940 = vmatpush1.bf16.msra.mxu0 0
      %941 = vmatprep.subr.bf16.mxu0 0
      %942 = vmatpush1.bf16.msra.mxu0 0
      %943 = vmatprep.subr.bf16.mxu0 0
      %944 = vmatpush1.bf16.msra.mxu0 0
      %945 = vmatprep.subr.bf16.mxu0 0
      %946 = vmatpush1.bf16.msra.mxu0 0
      %947 = vmatprep.subr.bf16.mxu0 0
      %948 = vmatpush1.bf16.msra.mxu0 0
      %949 = vmatprep.subr.bf16.mxu0 0
      %950 = vmatpush1.bf16.msra.mxu0 0
      %951 = vmatprep.subr.bf16.mxu0 0
      %952 = vmatpush1.bf16.msra.mxu0 0
      %953 = vmatprep.subr.bf16.mxu0 0
      %954 = vmatpush1.bf16.msra.mxu0 0
      %955 = vmatprep.subr.bf16.mxu0 0
      %956 = vmatpush1.bf16.msra.mxu0 0
      %957 = vmatprep.subr.bf16.mxu0 0
      %958 = vmatpush1.bf16.msra.mxu0 0
      %959 = vmatprep.subr.bf16.mxu0 0
      %960 = vmatpush1.bf16.msra.mxu0 0
      %961 = vmatprep.subr.bf16.mxu0 0
      %962 = vmatpush1.bf16.msra.mxu0 0
      %963 = vmatprep.mubr.bf16.mxu0 0
      %964 = vmatmul.mubr.bf16.gmra.mrb[0].mxu0 %v905
      %v965 = vpop.f32.mrb[0].mxu0
      %v966 = vadd.f32 0.0, %v965
      %v967 = vpop.f32.mrb[0].mxu0
      %v968 = vpop.f32.mrb[0].mxu0
      %v969 = vadd.f32 0.0, %v968
      %v970 = vpop.f32.mrb[0].mxu0
      %971 = vmatprep.mubr.bf16.mxu0 0
      %972 = vmatmul.mubr.bf16.gmra.mrb[0].mxu0 %v908
      %v973 = vpop.f32.mrb[0].mxu0
      %v974 = vadd.f32 0.0, %v973
      %v975 = vpop.f32.mrb[0].mxu0
      %v976 = vpop.f32.mrb[0].mxu0
      %v977 = vadd.f32 0.0, %v976
      %v978 = vpop.f32.mrb[0].mxu0
      %979 = vmatprep.mubr.bf16.mxu0 0
      %980 = vmatmul.mubr.bf16.gmra.mrb[0].mxu0 %v911
      %v981 = vpop.f32.mrb[0].mxu0
      %v982 = vadd.f32 0.0, %v981
      %v983 = vpop.f32.mrb[0].mxu0
      %v984 = vpop.f32.mrb[0].mxu0
      %v985 = vadd.f32 0.0, %v984
      %v986 = vpop.f32.mrb[0].mxu0
      %987 = vmatprep.mubr.bf16.mxu0 0
      %988 = vmatmul.mubr.bf16.gmra.mrb[0].mxu0 %v914
      %v989 = vpop.f32.mrb[0].mxu0
      %v990 = vadd.f32 0.0, %v989
      %v991 = vpop.f32.mrb[0].mxu0
      %v992 = vpop.f32.mrb[0].mxu0
      %v993 = vadd.f32 0.0, %v992
      %v994 = vpop.f32.mrb[0].mxu0
      %995 = vmatprep.mubr.bf16.mxu0 0
      %996 = vmatmul.mubr.bf16.gmra.mrb[0].mxu0 %v917
      %v997 = vpop.f32.mrb[0].mxu0
      %v998 = vadd.f32 0.0, %v997
      %v999 = vpop.f32.mrb[0].mxu0
      %v1000 = vpop.f32.mrb[0].mxu0
      %v1001 = vadd.f32 0.0, %v1000
      %v1002 = vpop.f32.mrb[0].mxu0
      %1003 = vmatprep.mubr.bf16.mxu0 0
      %1004 = vmatmul.mubr.bf16.gmra.mrb[0].mxu0 %v920
      %v1005 = vpop.f32.mrb[0].mxu0
      %v1006 = vadd.f32 0.0, %v1005
      %v1007 = vpop.f32.mrb[0].mxu0
      %v1008 = vpop.f32.mrb[0].mxu0
      %v1009 = vadd.f32 0.0, %v1008
      %v1010 = vpop.f32.mrb[0].mxu0
      %1011 = vmatprep.mubr.bf16.mxu0 0
      %1012 = vmatmul.mubr.bf16.gmra.mrb[0].mxu0 %v923
      %v1013 = vpop.f32.mrb[0].mxu0
      %v1014 = vadd.f32 0.0, %v1013
      %v1015 = vpop.f32.mrb[0].mxu0
      %v1016 = vpop.f32.mrb[0].mxu0
      %v1017 = vadd.f32 0.0, %v1016
      %v1018 = vpop.f32.mrb[0].mxu0
      %1019 = vmatprep.mubr.bf16.mxu0 0
      %1020 = vmatmul.mubr.bf16.gmra.mrb[0].mxu0 %v926
      %v1021 = vpop.f32.mrb[0].mxu0
      %v1022 = vadd.f32 0.0, %v1021
      %v1023 = vpop.f32.mrb[0].mxu0
      %v1024 = vpop.f32.mrb[0].mxu0
      %v1025 = vadd.f32 0.0, %v1024
      %v1026 = vpop.f32.mrb[0].mxu0
      %1027 = vdwg.mxu0
      %v1030 = vunpack.c.l.b16 %v837
      %v1031 = vunpack.c.l.b16 %v838
      %v1032 = vpack.c.b16 %v1031, %v1030
      %v1035 = vunpack.c.l.b16 %v853
      %v1036 = vunpack.c.l.b16 %v854
      %v1037 = vpack.c.b16 %v1036, %v1035
      %v1039 = vsel %vm292, %v1032, 0
      %v1042 = vsel %vm317, %v1037, 0
      %1044 = vmatprep.subr.bf16.mxu0 0
      %1045 = vmatpush1.bf16.msra.mxu0 %v1042
      %1046 = vmatprep.subr.bf16.mxu0 0
      %1047 = vmatpush1.bf16.msra.mxu0 0
      %1048 = vmatprep.subr.bf16.mxu0 0
      %1049 = vmatpush1.bf16.msra.mxu0 0
      %1050 = vmatprep.subr.bf16.mxu0 0
      %1051 = vmatpush1.bf16.msra.mxu0 0
      %1052 = vmatprep.subr.bf16.mxu0 0
      %1053 = vmatpush1.bf16.msra.mxu0 0
      %1054 = vmatprep.subr.bf16.mxu0 0
      %1055 = vmatpush1.bf16.msra.mxu0 0
      %1056 = vmatprep.subr.bf16.mxu0 0
      %1057 = vmatpush1.bf16.msra.mxu0 0
      %1058 = vmatprep.subr.bf16.mxu0 0
      %1059 = vmatpush1.bf16.msra.mxu0 0
      %1060 = vmatprep.subr.bf16.mxu0 0
      %1061 = vmatpush1.bf16.msra.mxu0 0
      %1062 = vmatprep.subr.bf16.mxu0 0
      %1063 = vmatpush1.bf16.msra.mxu0 0
      %1064 = vmatprep.subr.bf16.mxu0 0
      %1065 = vmatpush1.bf16.msra.mxu0 0
      %1066 = vmatprep.subr.bf16.mxu0 0
      %1067 = vmatpush1.bf16.msra.mxu0 0
      %1068 = vmatprep.subr.bf16.mxu0 0
      %1069 = vmatpush1.bf16.msra.mxu0 0
      %1070 = vmatprep.subr.bf16.mxu0 0
      %1071 = vmatpush1.bf16.msra.mxu0 0
      %1072 = vmatprep.subr.bf16.mxu0 0
      %1073 = vmatpush1.bf16.msra.mxu0 0
      %1074 = vmatprep.subr.bf16.mxu0 0
      %1075 = vmatpush1.bf16.msra.mxu0 0
      %1076 = vmatprep.mubr.bf16.mxu0 0
      %1077 = vmatmul.mubr.bf16.gmra.mrb[0].mxu0 %v1039
      %v1078 = vpop.f32.mrb[0].mxu0
      %v1079 = vadd.f32 %v966, %v1078
      %v1080 = vpop.f32.mrb[0].mxu0
      %v1081 = vpop.f32.mrb[0].mxu0
      %v1082 = vadd.f32 %v969, %v1081
      %v1083 = vpop.f32.mrb[0].mxu0
      %1084 = vmatprep.mubr.bf16.mxu0 0
      %1085 = vmatmul.mubr.bf16.gmra.mrb[0].mxu0 %v905
      %v1086 = vpop.f32.mrb[0].mxu0
      %v1087 = vadd.f32 %v974, %v1086
      %v1088 = vpop.f32.mrb[0].mxu0
      %v1089 = vpop.f32.mrb[0].mxu0
      %v1090 = vadd.f32 %v977, %v1089
      %v1091 = vpop.f32.mrb[0].mxu0
      %1092 = vmatprep.mubr.bf16.mxu0 0
      %1093 = vmatmul.mubr.bf16.gmra.mrb[0].mxu0 %v908
      %v1094 = vpop.f32.mrb[0].mxu0
      %v1095 = vadd.f32 %v982, %v1094
      %v1096 = vpop.f32.mrb[0].mxu0
      %v1097 = vpop.f32.mrb[0].mxu0
      %v1098 = vadd.f32 %v985, %v1097
      %v1099 = vpop.f32.mrb[0].mxu0
      %1100 = vmatprep.mubr.bf16.mxu0 0
      %1101 = vmatmul.mubr.bf16.gmra.mrb[0].mxu0 %v911
      %v1102 = vpop.f32.mrb[0].mxu0
      %v1103 = vadd.f32 %v990, %v1102
      %v1104 = vpop.f32.mrb[0].mxu0
      %v1105 = vpop.f32.mrb[0].mxu0
      %v1106 = vadd.f32 %v993, %v1105
      %v1107 = vpop.f32.mrb[0].mxu0
      %1108 = vmatprep.mubr.bf16.mxu0 0
      %1109 = vmatmul.mubr.bf16.gmra.mrb[0].mxu0 %v914
      %v1110 = vpop.f32.mrb[0].mxu0
      %v1111 = vadd.f32 %v998, %v1110
      %v1112 = vpop.f32.mrb[0].mxu0
      %v1113 = vpop.f32.mrb[0].mxu0
      %v1114 = vadd.f32 %v1001, %v1113
      %v1115 = vpop.f32.mrb[0].mxu0
      %1116 = vmatprep.mubr.bf16.mxu0 0
      %1117 = vmatmul.mubr.bf16.gmra.mrb[0].mxu0 %v917
      %v1118 = vpop.f32.mrb[0].mxu0
      %v1119 = vadd.f32 %v1006, %v1118
      %v1120 = vpop.f32.mrb[0].mxu0
      %v1121 = vpop.f32.mrb[0].mxu0
      %v1122 = vadd.f32 %v1009, %v1121
      %v1123 = vpop.f32.mrb[0].mxu0
      %1124 = vmatprep.mubr.bf16.mxu0 0
      %1125 = vmatmul.mubr.bf16.gmra.mrb[0].mxu0 %v920
      %v1126 = vpop.f32.mrb[0].mxu0
      %v1127 = vadd.f32 %v1014, %v1126
      %v1128 = vpop.f32.mrb[0].mxu0
      %v1129 = vpop.f32.mrb[0].mxu0
      %v1130 = vadd.f32 %v1017, %v1129
      %v1131 = vpop.f32.mrb[0].mxu0
      %1132 = vmatprep.mubr.bf16.mxu0 0
      %1133 = vmatmul.mubr.bf16.gmra.mrb[0].mxu0 %v923
      %v1134 = vpop.f32.mrb[0].mxu0
      %v1135 = vadd.f32 %v1022, %v1134
      %v1136 = vpop.f32.mrb[0].mxu0
      %v1137 = vpop.f32.mrb[0].mxu0
      %v1138 = vadd.f32 %v1025, %v1137
      %v1139 = vpop.f32.mrb[0].mxu0
      %1140 = vdwg.mxu0
      %v1141 = vld [vmem:[%s206 + $0x50] sm:$0xf]
      %v1142 = vld [vmem:[%s206 + $0x54] sm:$0xf]
      %v1143 = vld [vmem:[%s206 + $0x58] sm:$0xf]
      %v1144 = vld [vmem:[%s206 + $0x5c] sm:$0xf]
      %v1145 = vld [vmem:[%s206 + $0x60] sm:$0xf]
      %v1146 = vld [vmem:[%s206 + $0x64] sm:$0xf]
      %v1147 = vld [vmem:[%s206 + $0x68] sm:$0xf]
      %v1148 = vld [vmem:[%s206 + $0x6c] sm:$0xf]
      %v1149 = vld [vmem:[%s206 + $0x70] sm:$0xf]
      %v1150 = vld [vmem:[%s206 + $0x74] sm:$0xf]
      %v1151 = vld [vmem:[%s206 + $0x78] sm:$0xf]
      %v1152 = vld [vmem:[%s206 + $0x7c] sm:$0xf]
      %v1153 = vld [vmem:[%s206 + $0x80] sm:$0xf]
      %v1154 = vld [vmem:[%s206 + $0x84] sm:$0xf]
      %v1155 = vld [vmem:[%s206 + $0x88] sm:$0xf]
      %v1156 = vld [vmem:[%s206 + $0x8c] sm:$0xf]
      %v1157 = vld [vmem:[%s547] sm:$0xf]
      %v1158 = vld [vmem:[%s547 + $0x4] sm:$0x3]
      %v1175 = vunpack.c.l.b16 %v1141
      %v1176 = vunpack.c.l.b16 %v1142
      %v1177 = vunpack.c.l.b16 %v1143
      %v1178 = vunpack.c.l.b16 %v1144
      %v1179 = vunpack.c.l.b16 %v1145
      %v1180 = vunpack.c.l.b16 %v1146
      %v1181 = vunpack.c.l.b16 %v1147
      %v1182 = vunpack.c.l.b16 %v1148
      %v1183 = vunpack.c.l.b16 %v1149
      %v1184 = vunpack.c.l.b16 %v1150
      %v1185 = vunpack.c.l.b16 %v1151
      %v1186 = vunpack.c.l.b16 %v1152
      %v1187 = vunpack.c.l.b16 %v1153
      %v1188 = vunpack.c.l.b16 %v1154
      %v1189 = vunpack.c.l.b16 %v1155
      %v1190 = vunpack.c.l.b16 %v1156
      %v1191 = vpack.c.b16 %v1176, %v1175
      %v1192 = vpack.c.b16 %v1178, %v1177
      %v1193 = vpack.c.b16 %v1180, %v1179
      %v1194 = vpack.c.b16 %v1182, %v1181
      %v1195 = vpack.c.b16 %v1184, %v1183
      %v1196 = vpack.c.b16 %v1186, %v1185
      %v1197 = vpack.c.b16 %v1188, %v1187
      %v1198 = vpack.c.b16 %v1190, %v1189
      %v1201 = vunpack.c.l.b16 %v1157
      %v1202 = vunpack.c.l.b16 %v1158
      %v1203 = vpack.c.b16 %v1202, %v1201
      %v1205 = vsel %vm292, %v1191, 0
      %v1208 = vsel %vm292, %v1192, 0
      %v1211 = vsel %vm292, %v1193, 0
      %v1214 = vsel %vm292, %v1194, 0
      %v1217 = vsel %vm292, %v1195, 0
      %v1220 = vsel %vm292, %v1196, 0
      %v1223 = vsel %vm292, %v1197, 0
      %v1226 = vsel %vm292, %v1198, 0
      %v1229 = vsel %vm317, %v1203, 0
      %1231 = vmatprep.subr.bf16.mxu0 0
      %1232 = vmatpush1.bf16.msra.mxu0 %v1229
      %1233 = vmatprep.subr.bf16.mxu0 0
      %1234 = vmatpush1.bf16.msra.mxu0 0
      %1235 = vmatprep.subr.bf16.mxu0 0
      %1236 = vmatpush1.bf16.msra.mxu0 0
      %1237 = vmatprep.subr.bf16.mxu0 0
      %1238 = vmatpush1.bf16.msra.mxu0 0
      %1239 = vmatprep.subr.bf16.mxu0 0
      %1240 = vmatpush1.bf16.msra.mxu0 0
      %1241 = vmatprep.subr.bf16.mxu0 0
      %1242 = vmatpush1.bf16.msra.mxu0 0
      %1243 = vmatprep.subr.bf16.mxu0 0
      %1244 = vmatpush1.bf16.msra.mxu0 0
      %1245 = vmatprep.subr.bf16.mxu0 0
      %1246 = vmatpush1.bf16.msra.mxu0 0
      %1247 = vmatprep.subr.bf16.mxu0 0
      %1248 = vmatpush1.bf16.msra.mxu0 0
      %1249 = vmatprep.subr.bf16.mxu0 0
      %1250 = vmatpush1.bf16.msra.mxu0 0
      %1251 = vmatprep.subr.bf16.mxu0 0
      %1252 = vmatpush1.bf16.msra.mxu0 0
      %1253 = vmatprep.subr.bf16.mxu0 0
      %1254 = vmatpush1.bf16.msra.mxu0 0
      %1255 = vmatprep.subr.bf16.mxu0 0
      %1256 = vmatpush1.bf16.msra.mxu0 0
      %1257 = vmatprep.subr.bf16.mxu0 0
      %1258 = vmatpush1.bf16.msra.mxu0 0
      %1259 = vmatprep.subr.bf16.mxu0 0
      %1260 = vmatpush1.bf16.msra.mxu0 0
      %1261 = vmatprep.subr.bf16.mxu0 0
      %1262 = vmatpush1.bf16.msra.mxu0 0
      %1263 = vmatprep.mubr.bf16.mxu0 0
      %1264 = vmatmul.mubr.bf16.gmra.mrb[0].mxu0 %v1205
      %v1265 = vpop.f32.mrb[0].mxu0
      %v1266 = vadd.f32 0.0, %v1265
      %v1267 = vpop.f32.mrb[0].mxu0
      %v1268 = vpop.f32.mrb[0].mxu0
      %v1269 = vadd.f32 0.0, %v1268
      %v1270 = vpop.f32.mrb[0].mxu0
      %1271 = vmatprep.mubr.bf16.mxu0 0
      %1272 = vmatmul.mubr.bf16.gmra.mrb[0].mxu0 %v1208
      %v1273 = vpop.f32.mrb[0].mxu0
      %v1274 = vadd.f32 0.0, %v1273
      %v1275 = vpop.f32.mrb[0].mxu0
      %v1276 = vpop.f32.mrb[0].mxu0
      %v1277 = vadd.f32 0.0, %v1276
      %v1278 = vpop.f32.mrb[0].mxu0
      %1279 = vmatprep.mubr.bf16.mxu0 0
      %1280 = vmatmul.mubr.bf16.gmra.mrb[0].mxu0 %v1211
      %v1281 = vpop.f32.mrb[0].mxu0
      %v1282 = vadd.f32 0.0, %v1281
      %v1283 = vpop.f32.mrb[0].mxu0
      %v1284 = vpop.f32.mrb[0].mxu0
      %v1285 = vadd.f32 0.0, %v1284
      %v1286 = vpop.f32.mrb[0].mxu0
      %1287 = vmatprep.mubr.bf16.mxu0 0
      %1288 = vmatmul.mubr.bf16.gmra.mrb[0].mxu0 %v1214
      %v1289 = vpop.f32.mrb[0].mxu0
      %v1290 = vadd.f32 0.0, %v1289
      %v1291 = vpop.f32.mrb[0].mxu0
      %v1292 = vpop.f32.mrb[0].mxu0
      %v1293 = vadd.f32 0.0, %v1292
      %v1294 = vpop.f32.mrb[0].mxu0
      %1295 = vmatprep.mubr.bf16.mxu0 0
      %1296 = vmatmul.mubr.bf16.gmra.mrb[0].mxu0 %v1217
      %v1297 = vpop.f32.mrb[0].mxu0
      %v1298 = vadd.f32 0.0, %v1297
      %v1299 = vpop.f32.mrb[0].mxu0
      %v1300 = vpop.f32.mrb[0].mxu0
      %v1301 = vadd.f32 0.0, %v1300
      %v1302 = vpop.f32.mrb[0].mxu0
      %1303 = vmatprep.mubr.bf16.mxu0 0
      %1304 = vmatmul.mubr.bf16.gmra.mrb[0].mxu0 %v1220
      %v1305 = vpop.f32.mrb[0].mxu0
      %v1306 = vadd.f32 0.0, %v1305
      %v1307 = vpop.f32.mrb[0].mxu0
      %v1308 = vpop.f32.mrb[0].mxu0
      %v1309 = vadd.f32 0.0, %v1308
      %v1310 = vpop.f32.mrb[0].mxu0
      %1311 = vmatprep.mubr.bf16.mxu0 0
      %1312 = vmatmul.mubr.bf16.gmra.mrb[0].mxu0 %v1223
      %v1313 = vpop.f32.mrb[0].mxu0
      %v1314 = vadd.f32 0.0, %v1313
      %v1315 = vpop.f32.mrb[0].mxu0
      %v1316 = vpop.f32.mrb[0].mxu0
      %v1317 = vadd.f32 0.0, %v1316
      %v1318 = vpop.f32.mrb[0].mxu0
      %1319 = vmatprep.mubr.bf16.mxu0 0
      %1320 = vmatmul.mubr.bf16.gmra.mrb[0].mxu0 %v1226
      %v1321 = vpop.f32.mrb[0].mxu0
      %v1322 = vadd.f32 0.0, %v1321
      %v1323 = vpop.f32.mrb[0].mxu0
      %v1324 = vpop.f32.mrb[0].mxu0
      %v1325 = vadd.f32 0.0, %v1324
      %v1326 = vpop.f32.mrb[0].mxu0
      %1327 = vdwg.mxu0
      %v1328 = vadd.f32 %v1079, %v1266
      %v1329 = vadd.f32 %v1082, %v1269
      %v1330 = vadd.f32 %v1087, %v1274
      %v1331 = vadd.f32 %v1090, %v1277
      %v1332 = vadd.f32 %v1095, %v1282
      %v1333 = vadd.f32 %v1098, %v1285
      %v1334 = vadd.f32 %v1103, %v1290
      %v1335 = vadd.f32 %v1106, %v1293
      %v1336 = vadd.f32 %v1111, %v1298
      %v1337 = vadd.f32 %v1114, %v1301
      %v1338 = vadd.f32 %v1119, %v1306
      %v1339 = vadd.f32 %v1122, %v1309
      %v1340 = vadd.f32 %v1127, %v1314
      %v1341 = vadd.f32 %v1130, %v1317
      %v1342 = vadd.f32 %v1135, %v1322
      %v1343 = vadd.f32 %v1138, %v1325
      %v1344 = vadd.f32 %v1328, %v739
      %v1345 = vadd.f32 %v1329, %v739
      %v1346 = vadd.f32 %v1330, %v739
      %v1347 = vadd.f32 %v1331, %v739
      %v1348 = vadd.f32 %v1332, %v739
      %v1349 = vadd.f32 %v1333, %v739
      %v1350 = vadd.f32 %v1334, %v739
      %v1351 = vadd.f32 %v1335, %v739
      %v1352 = vadd.f32 %v1336, %v739
      %v1353 = vadd.f32 %v1337, %v739
      %v1354 = vadd.f32 %v1338, %v739
      %v1355 = vadd.f32 %v1339, %v739
      %v1356 = vadd.f32 %v1340, %v739
      %v1357 = vadd.f32 %v1341, %v739
      %v1358 = vadd.f32 %v1342, %v739
      %v1359 = vadd.f32 %v1343, %v739
      %v1360 = vpack.c.bf16 %v1345, %v1344
      %v1361 = vpack.c.bf16 %v1347, %v1346
      %v1362 = vpack.c.bf16 %v1349, %v1348
      %v1363 = vpack.c.bf16 %v1351, %v1350
      %v1364 = vpack.c.bf16 %v1353, %v1352
      %v1365 = vpack.c.bf16 %v1355, %v1354
      %v1366 = vpack.c.bf16 %v1357, %v1356
      %v1367 = vpack.c.bf16 %v1359, %v1358
      %v1376 = vunpack.c.l.b16 %v1360
      %v1377 = vunpack.c.h.b16 %v1360
      %v1378 = vunpack.c.l.b16 %v1361
      %v1379 = vunpack.c.h.b16 %v1361
      %v1380 = vunpack.c.l.b16 %v1362
      %v1381 = vunpack.c.h.b16 %v1362
      %v1382 = vunpack.c.l.b16 %v1363
      %v1383 = vunpack.c.h.b16 %v1363
      %v1384 = vunpack.c.l.b16 %v1364
      %v1385 = vunpack.c.h.b16 %v1364
      %v1386 = vunpack.c.l.b16 %v1365
      %v1387 = vunpack.c.h.b16 %v1365
      %v1388 = vunpack.c.l.b16 %v1366
      %v1389 = vunpack.c.h.b16 %v1366
      %v1390 = vunpack.c.l.b16 %v1367
      %v1391 = vunpack.c.h.b16 %v1367
      %v1392 = vpack.c.b16 %v1376, %v1376
      %v1393 = vpack.c.b16 %v1377, %v1377
      %v1394 = vpack.c.b16 %v1378, %v1378
      %v1395 = vpack.c.b16 %v1379, %v1379
      %v1396 = vpack.c.b16 %v1380, %v1380
      %v1397 = vpack.c.b16 %v1381, %v1381
      %v1398 = vpack.c.b16 %v1382, %v1382
      %v1399 = vpack.c.b16 %v1383, %v1383
      %v1400 = vpack.c.b16 %v1384, %v1384
      %v1401 = vpack.c.b16 %v1385, %v1385
      %v1402 = vpack.c.b16 %v1386, %v1386
      %v1403 = vpack.c.b16 %v1387, %v1387
      %v1404 = vpack.c.b16 %v1388, %v1388
      %v1405 = vpack.c.b16 %v1389, %v1389
      %v1406 = vpack.c.b16 %v1390, %v1390
      %v1407 = vpack.c.b16 %v1391, %v1391
      %1424 = vst [vmem:[%s221 + $0x40] sm:$0xf] %v1392
      %1425 = vst [vmem:[%s221 + $0x44] sm:$0xf] %v1393
      %1426 = vst [vmem:[%s221 + $0x48] sm:$0xf] %v1394
      %1427 = vst [vmem:[%s221 + $0x4c] sm:$0xf] %v1395
      %1428 = vst [vmem:[%s221 + $0x50] sm:$0xf] %v1396
      %1429 = vst [vmem:[%s221 + $0x54] sm:$0xf] %v1397
      %1430 = vst [vmem:[%s221 + $0x58] sm:$0xf] %v1398
      %1431 = vst [vmem:[%s221 + $0x5c] sm:$0xf] %v1399
      %1432 = vst [vmem:[%s221 + $0x60] sm:$0xf] %v1400
      %1433 = vst [vmem:[%s221 + $0x64] sm:$0xf] %v1401
      %1434 = vst [vmem:[%s221 + $0x68] sm:$0xf] %v1402
      %1435 = vst [vmem:[%s221 + $0x6c] sm:$0xf] %v1403
      %1436 = vst [vmem:[%s221 + $0x70] sm:$0xf] %v1404
      %1437 = vst [vmem:[%s221 + $0x74] sm:$0xf] %v1405
      %1438 = vst [vmem:[%s221 + $0x78] sm:$0xf] %v1406
      %1439 = vst [vmem:[%s221 + $0x7c] sm:$0xf] %v1407
      %p1440 = scmp.lt.s32.totalorder %s18, 1
      %s1441 = scalar_select %p1440, %s18, 1
      %p1442 = scmp.lt.s32.totalorder %s19, 0
      %s1443 = scalar_select %p1442, %s19, 0
      %s1444 = smul.addr %s1441, 32
      %s1445 = sadd.s32 %s1443, %s1444
      %s1446 = smul.addr %s1445, 4
      %s1447 = scalar_lea.vmem %s3, %s1446
      // Predicated region
      $region33: #{conv_bn_forward.1} parent=31 // pred_check
        %p1448 = pneg %p124
      $region34: #{conv_bn_forward.1} parent=31 // pred_check_branch
        %1450 = sbr.rel (%p1448) target = $region36
      $region35: #{conv_bn_forward.1} parent=31 // pred_region
        _
      $region36: #{conv_bn_forward.1} parent=31 // pred_fallthru
        _
    $region32: #{conv_bn_forward.1} parent=5 // pred_fallthru
      _
    %p1451 = scmp.le.s32.totalorder 2, %s9
    // Predicated region
    $region37: #{conv_bn_forward.1} parent=5 // pred_check
      %p1452 = pneg %p1451
    $region38: #{conv_bn_forward.1} parent=5 // pred_check_branch
      %1454 = sbr.rel (%p1452) target = $region40
    $region39: #{conv_bn_forward.1} parent=5 // pred_region
      %s1455 = ssub.s32 %s9, 2
      // Predicated region
      $region41: #{conv_bn_forward.1} parent=39 // pred_check
        %p1456 = pneg %p130
      $region42: #{conv_bn_forward.1} parent=39 // pred_check_branch
        %1458 = sbr.rel (%p1456) target = $region44
      $region43: #{conv_bn_forward.1} parent=39 // pred_region
        %p1459 = scmp.lt.s32.totalorder %s20, 1
        %s1460 = scalar_select %p1459, %s20, 1
        %p1461 = scmp.lt.s32.totalorder %s21, 0
        %s1462 = scalar_select %p1461, %s21, 0
        %s1463 = smul.addr %s1460, 32
        %s1464 = sadd.s32 %s1462, %s1463
        %s1465 = smul.addr %s1464, 4
        %s1466 = scalar_lea.vmem %s3, %s1465
      $region44: #{conv_bn_forward.1} parent=39 // pred_fallthru
        _
    $region40: #{conv_bn_forward.1} parent=5 // pred_fallthru
      _
  $region6: #{conv_bn_forward.1} parent=0 // loop_footer
    %s13 = sadd.s32 1, %s9
  $region7: #{conv_bn_forward.1} parent=0 // loop_footer_branch
    %8 = sbr.rel target = $region3
  $region8: #{conv_bn_forward.1} parent=0 // loop_exit
    _

</llo_original>
